<compile_context>
chip_gen: v7x
topology: tpu7x:2x2x1
jax: 0.10.0
libtpu: 0.0.40
codegen_flags: <defaults>
</compile_context>

<pallas_src>
import functools

import jax
import jax.numpy as jnp
from jax import lax
from jax.experimental import pallas as pl
from jax.experimental.pallas import tpu as pltpu


def _focal_loss_kernel(*refs, gamma, use_alpha, tile_s, tiles_per_chunk, s_valid):
    if use_alpha:
        x_ref, t_ref, a_ref, out_ref = refs
    else:
        x_ref, t_ref, out_ref = refs
        a_ref = None

    p = pl.program_id(1)
    j = pl.program_id(2)

    @pl.when(j == 0)
    def _():
        out_ref[...] = jnp.zeros_like(out_ref)

    x = x_ref[0].astype(jnp.float32)            # (C, tile_s) logits
    t = t_ref[0]                                # (1, tile_s) int32 targets

    # log-softmax pieces over the class axis (sublanes).
    m = jnp.max(x, axis=0, keepdims=True)                    # (1, ts)
    z = x - m                                                 # (C, ts), <= 0
    ez = jnp.exp(z)                                           # (C, ts)
    sez = jnp.sum(ez, axis=0, keepdims=True)                  # (1, ts)

    # one-hot "gather" of z at the target class (single cross-sublane reduce);
    # avoids materializing the full (C, ts) log_softmax.
    onehot = (lax.broadcasted_iota(jnp.int32, x.shape, 0) == t).astype(jnp.float32)
    zt = jnp.sum(onehot * z, axis=0, keepdims=True)           # (1, ts)
    logpt = zt - jnp.log(sez)                                 # unweighted log p_t

    loss = -logpt
    if use_alpha:
        a = a_ref[...].astype(jnp.float32)                    # (C, 1)
        at = jnp.sum(onehot * a, axis=0, keepdims=True)       # alpha[target]
        loss = loss * at

    g = float(gamma)
    if g != 0.0:                     # trace-time specialization of (1-pt)**gamma
        pt = jnp.exp(logpt)          # exactly mirrors the reference (pt = exp(logpt))
        omp = 1.0 - pt
        if g.is_integer() and 1.0 <= g <= 16.0:
            f = omp
            for _ in range(int(g) - 1):
                f = f * omp          # VPU multiplies, no transcendentals
        else:
            # TODO(synk): non-integer gamma falls back to pow (exp+log on EUP).
            f = omp ** g
        loss = f * loss

    if s_valid is not None:          # mask the ragged (partially OOB) final tile
        col = (p * tiles_per_chunk + j) * tile_s + lax.broadcasted_iota(
            jnp.int32, (1, tile_s), 1)
        loss = jnp.where(col < s_valid, loss, 0.0)

    # lane-dense vector accumulation; no per-step cross-lane reduction.
    out_ref[0] = out_ref[0] + loss


def _pick_tile_s(s, c, itemsize, vmem_cap):
    """Largest lane-aligned spatial tile: ~1 MiB+ per block, ~8-deep pipeline."""
    row_bytes = max(c * itemsize, 1)
    total = row_bytes * s
    budget = max(vmem_cap // 16, 1 << 20)            # hard per-block cap
    target = min(budget, max(total // 8, 1 << 20))   # keep a few tiles in flight
    if total <= target:
        return s
    t = (target // row_bytes) // 128 * 128
    t = max(t, 128)
    if s >= 128:
        t = min(t, (s // 128) * 128)
    return t


def focal_loss(logits, target, alpha=None, gamma=0.0, size_average=True,
               *, tile_s=None):
    """Pallas FocalLoss forward (matches the PyTorch module's semantics)."""
    x = jnp.asarray(logits)
    if not jnp.issubdtype(x.dtype, jnp.floating):
        x = x.astype(jnp.float32)
    # NOTE: no wrapper f32 upcast -- bf16 logits are DMA'd in bf16 and only
    # promoted to f32 inside the kernel (halves HBM traffic for bf16 inputs).

    if x.ndim > 2:
        g_dim, c = x.shape[0], x.shape[1]
        x = x.reshape(g_dim, c, -1)                          # (G, C, S): pure view
        t = jnp.asarray(target, jnp.int32).reshape(g_dim, 1, -1)
    else:
        n, c = x.shape
        # TODO(synk): the 2-D (N, C) path pays one XLA transpose to reach the
        # lane-dense class-major layout; a native (N, C) kernel would waste
        # ~128/C lanes for small C and become compute-bound.
        x = x.T.reshape(1, c, n)
        t = jnp.asarray(target, jnp.int32).reshape(1, 1, n)

    G, C, S = x.shape
    n_total = G * S

    # alpha -> (C, 1) column of class weights (module semantics).
    use_alpha = alpha is not None
    if use_alpha:
        if isinstance(alpha, (float, int)):
            assert C == 2, "scalar alpha implies 2 classes"
            alpha_vec = jnp.array([[float(alpha)], [1.0 - float(alpha)]], jnp.float32)
        else:
            alpha_vec = jnp.asarray(alpha, jnp.float32).reshape(-1, 1)
            assert alpha_vec.shape[0] == C

    itemsize = jnp.dtype(x.dtype).itemsize
    try:
        vmem_cap = int(pltpu.get_tpu_info().vmem_capacity_bytes)
    except Exception:
        vmem_cap = 64 * 1024 * 1024          # conservative (v7x per-TC) fallback
    if tile_s is None:
        tile_s = _pick_tile_s(S, C, itemsize, vmem_cap)
    if tile_s >= S:
        tile_s = S
    else:
        tile_s = max(128, (tile_s // 128) * 128)   # partial tiles must be lane-aligned
        if tile_s >= S:
            tile_s = S

    num_tiles = pl.cdiv(S, tile_s)
    # Split spatial tiles into 2 parallel chunks when the batch axis alone
    # cannot feed both TensorCores (v7x megacore).  Even split only, so no
    # fully out-of-bounds blocks are ever generated.
    n_par = 2 if (G == 1 and num_tiles >= 2 and num_tiles % 2 == 0) else 1
    tiles_per_chunk = num_tiles // n_par
    covered = num_tiles * tile_s
    s_valid = S if covered != S else None     # mask only when the last tile is ragged

    block_bytes = (2 * C * tile_s * itemsize     # logits, double-buffered
                   + 2 * tile_s * 4              # targets, double-buffered
                   + 2 * tile_s * 4              # resident output block
                   + (2 * C * 4 if use_alpha else 0))
    vmem_limit = int(min(max(4 * block_bytes, 32 * 1024 * 1024),
                         int(0.75 * vmem_cap)))

    kernel = functools.partial(
        _focal_loss_kernel, gamma=float(gamma), use_alpha=use_alpha,
        tile_s=tile_s, tiles_per_chunk=tiles_per_chunk, s_valid=s_valid)

    in_specs = [
        pl.BlockSpec((1, C, tile_s),
                     lambda g, p, j: (g, 0, p * tiles_per_chunk + j)),
        pl.BlockSpec((1, 1, tile_s),
                     lambda g, p, j: (g, 0, p * tiles_per_chunk + j)),
    ]
    args = [x, t]
    if use_alpha:
        in_specs.append(pl.BlockSpec((C, 1), lambda g, p, j: (0, 0)))
        args.append(alpha_vec)

    out_specs = pl.BlockSpec((1, 1, tile_s),
                             lambda g, p, j: (g * n_par + p, 0, 0))

    partials = pl.pallas_call(
        kernel,
        out_shape=jax.ShapeDtypeStruct((G * n_par, 1, tile_s), jnp.float32),
        grid_spec=pltpu.PrefetchScalarGridSpec(
            num_scalar_prefetch=0,
            grid=(G, n_par, tiles_per_chunk),
            in_specs=in_specs,
            out_specs=out_specs,
        ),
        compiler_params=pltpu.CompilerParams(
            dimension_semantics=("parallel", "parallel", "arbitrary"),
            vmem_limit_bytes=vmem_limit),
    )(*args)

    loss_sum = jnp.sum(partials)
    if size_average:
        return loss_sum / n_total
    return loss_sum


def _reference_focal_loss(logits, target, alpha, gamma, size_average):
    """Pure-JAX reference mirroring the PyTorch module."""
    x = jnp.asarray(logits, jnp.float32)
    if x.ndim > 2:
        b, c = x.shape[0], x.shape[1]
        x = x.reshape(b, c, -1).transpose(0, 2, 1).reshape(-1, c)
    t = jnp.asarray(target, jnp.int32).reshape(-1)
    log_sm = jax.nn.log_softmax(x, axis=1)
    logpt = jnp.take_along_axis(log_sm, t[:, None], axis=1)[:, 0]
    pt = jnp.exp(logpt)
    if alpha is not None:
        if isinstance(alpha, (float, int)):
            a = jnp.array([float(alpha), 1.0 - float(alpha)], jnp.float32)
        else:
            a = jnp.asarray(alpha, jnp.float32)
        logpt = logpt * a[t]
    loss = -1.0 * (1.0 - pt) ** float(gamma) * logpt
    return loss.mean() if size_average else loss.sum()


if __name__ == "__main__":
    key = jax.random.PRNGKey(0)
    k1, k2, k3, k4, k5, k6, k7, k8 = jax.random.split(key, 8)

    # 1) NCHW path (module's >2-dim branch), list alpha, gamma=2, mean.
    B, C, H, W = 2, 4, 16, 16
    logits = jax.random.normal(k1, (B, C, H, W), jnp.float32)
    target = jax.random.randint(k2, (B, H, W), 0, C, jnp.int32)
    alpha = [0.1, 0.2, 0.3, 0.4]
    out = focal_loss(logits, target, alpha=alpha, gamma=2.0, size_average=True)
    out = jax.block_until_ready(out)
    ref = _reference_focal_loss(logits, target, alpha, 2.0, True)
    assert jnp.allclose(out, ref, rtol=2e-5, atol=1e-6), (out, ref)

    # 2) 2-D (N, C) path, scalar alpha, gamma=0 (module defaults), sum.
    N2, C2 = 128, 2
    logits2 = jax.random.normal(k3, (N2, C2), jnp.float32)
    target2 = jax.random.randint(k4, (N2,), 0, C2, jnp.int32)
    out2 = focal_loss(logits2, target2, alpha=0.25, gamma=0, size_average=False)
    out2 = jax.block_until_ready(out2)
    ref2 = _reference_focal_loss(logits2, target2, 0.25, 0.0, False)
    assert jnp.allclose(out2, ref2, rtol=2e-5, atol=1e-5), (out2, ref2)

    # 3) multi-tile + parallel-chunk path (G=1, 4 tiles of 128), alpha=None.
    B3, C3, H3, W3 = 1, 4, 16, 32
    logits3 = jax.random.normal(k5, (B3, C3, H3, W3), jnp.float32)
    target3 = jax.random.randint(k6, (B3, H3, W3), 0, C3, jnp.int32)
    out3 = focal_loss(logits3, target3, alpha=None, gamma=2.0,
                      size_average=True, tile_s=128)
    out3 = jax.block_until_ready(out3)
    ref3 = _reference_focal_loss(logits3, target3, None, 2.0, True)
    assert jnp.allclose(out3, ref3, rtol=2e-5, atol=1e-6), (out3, ref3)

    # 4) ragged final tile (S=300 not a multiple of 128), odd class count, sum.
    B4, C4, H4, W4 = 2, 3, 15, 20
    logits4 = jax.random.normal(k7, (B4, C4, H4, W4), jnp.float32)
    target4 = jax.random.randint(k8, (B4, H4, W4), 0, C4, jnp.int32)
    alpha4 = [0.2, 0.3, 0.5]
    out4 = focal_loss(logits4, target4, alpha=alpha4, gamma=3.0,
                      size_average=False, tile_s=128)
    out4 = jax.block_until_ready(out4)
    ref4 = _reference_focal_loss(logits4, target4, alpha4, 3.0, False)
    assert jnp.allclose(out4, ref4, rtol=2e-5, atol=1e-5), (out4, ref4)

    print("KERNEL_OK")
</pallas_src>

<mosaic_0001>
module attributes {stable_mosaic.version = 11 : i64} {
  func.func @_focal_loss_kernel(%arg0: i32, %arg1: i32, %arg2: i32, %arg3: memref<1x4x256xf32, #tpu.memory_space<vmem>>, %arg4: memref<1x1x256xi32, #tpu.memory_space<vmem>>, %arg5: memref<4x1xf32, #tpu.memory_space<vmem>>, %arg6: memref<1x1x256xf32, #tpu.memory_space<vmem>>) attributes {dimension_semantics = [#tpu.dimension_semantics<parallel>, #tpu.dimension_semantics<parallel>, #tpu.dimension_semantics<arbitrary>], iteration_bounds = array<i64: 2, 1, 1>, scalar_prefetch = 0 : i64, scratch_operands = 0 : i64, tpu.core_type = #tpu.core_type<tc>, window_params = [{transform_indices = @transform_0, window_bounds = array<i64: 1, 4, 256>}, {transform_indices = @transform_1, window_bounds = array<i64: 1, 1, 256>}, {pipeline_mode = #tpu.pipeline_mode<synchronous>, transform_indices = @transform_2, window_bounds = array<i64: 4, 1>}, {transform_indices = @transform_3, window_bounds = array<i64: 1, 1, 256>}]} {
    %c0_i32 = arith.constant 0 : i32
    %0 = arith.cmpi eq, %arg2, %c0_i32 : i32
    %1 = arith.extui %0 : i1 to i32
    %c0_i32_0 = arith.constant 0 : i32
    %2 = arith.cmpi ne, %1, %c0_i32_0 : i32
    scf.if %2 {
      %cst_19 = arith.constant 0.000000e+00 : f32
      %43 = vector.broadcast %cst_19 : f32 to vector<1x1x256xf32>
      %c0_20 = arith.constant 0 : index
      %c0_21 = arith.constant 0 : index
      %c0_22 = arith.constant 0 : index
      %44 = vector.load %arg6[%c0_20, %c0_21, %c0_22] : memref<1x1x256xf32, #tpu.memory_space<vmem>>, vector<1x1x256xf32>
      tpu.vector_store %arg6[%c0_20, %c0_21, %c0_22], %43 {strides = array<i32>} : memref<1x1x256xf32, #tpu.memory_space<vmem>>, vector<1x1x256xf32>,
    } else {
    }
    %c0 = arith.constant 0 : index
    %c0_1 = arith.constant 0 : index
    %c0_2 = arith.constant 0 : index
    %3 = vector.load %arg3[%c0, %c0_1, %c0_2] : memref<1x4x256xf32, #tpu.memory_space<vmem>>, vector<1x4x256xf32>
    %4 = vector.shape_cast %3 : vector<1x4x256xf32> to vector<4x256xf32>
    %c0_3 = arith.constant 0 : index
    %c0_4 = arith.constant 0 : index
    %c0_5 = arith.constant 0 : index
    %5 = vector.load %arg4[%c0_3, %c0_4, %c0_5] : memref<1x1x256xi32, #tpu.memory_space<vmem>>, vector<1x1x256xi32>
    %6 = vector.shape_cast %5 : vector<1x1x256xi32> to vector<1x256xi32>
    %cst = arith.constant dense<0xFF800000> : vector<256xf32>
    %7 = vector.multi_reduction <maximumf>, %4, %cst [0] : vector<4x256xf32> to vector<256xf32>
    %8 = vector.shape_cast %7 : vector<256xf32> to vector<1x256xf32>
    %9 = vector.broadcast %8 : vector<1x256xf32> to vector<4x256xf32>
    %10 = arith.subf %4, %9 : vector<4x256xf32>
    %11 = math.exp %10 : vector<4x256xf32>
    %cst_6 = arith.constant dense<0.000000e+00> : vector<256xf32>
    %12 = vector.multi_reduction <add>, %11, %cst_6 [0] : vector<4x256xf32> to vector<256xf32>
    %13 = vector.shape_cast %12 : vector<256xf32> to vector<1x256xf32>
    %14 = tpu.iota {dimensions = array<i32: 0>} : vector<4x256xi32>
    %15 = vector.broadcast %6 : vector<1x256xi32> to vector<4x256xi32>
    %16 = arith.cmpi eq, %14, %15 : vector<4x256xi32>
    %17 = arith.extui %16 : vector<4x256xi1> to vector<4x256xi32>
    %18 = arith.sitofp %17 : vector<4x256xi32> to vector<4x256xf32>
    %19 = arith.mulf %18, %10 : vector<4x256xf32>
    %cst_7 = arith.constant dense<0.000000e+00> : vector<256xf32>
    %20 = vector.multi_reduction <add>, %19, %cst_7 [0] : vector<4x256xf32> to vector<256xf32>
    %21 = vector.shape_cast %20 : vector<256xf32> to vector<1x256xf32>
    %22 = math.log %13 : vector<1x256xf32>
    %23 = arith.subf %21, %22 : vector<1x256xf32>
    %cst_8 = arith.constant 0.000000e+00 : f32
    %24 = vector.broadcast %cst_8 : f32 to vector<1x256xf32>
    %25 = arith.subf %24, %23 : vector<1x256xf32>
    %c0_9 = arith.constant 0 : index
    %c0_10 = arith.constant 0 : index
    %26 = vector.load %arg5[%c0_9, %c0_10] : memref<4x1xf32, #tpu.memory_space<vmem>>, vector<4x1xf32>
    %27 = vector.broadcast %26 : vector<4x1xf32> to vector<4x256xf32>
    %28 = arith.mulf %18, %27 : vector<4x256xf32>
    %cst_11 = arith.constant dense<0.000000e+00> : vector<256xf32>
    %29 = vector.multi_reduction <add>, %28, %cst_11 [0] : vector<4x256xf32> to vector<256xf32>
    %30 = vector.shape_cast %29 : vector<256xf32> to vector<1x256xf32>
    %31 = arith.mulf %25, %30 : vector<1x256xf32>
    %32 = math.exp %23 : vector<1x256xf32>
    %cst_12 = arith.constant 1.000000e+00 : f32
    %33 = vector.broadcast %cst_12 : f32 to vector<1x256xf32>
    %34 = arith.subf %33, %32 : vector<1x256xf32>
    %35 = arith.mulf %34, %34 : vector<1x256xf32>
    %36 = arith.mulf %35, %31 : vector<1x256xf32>
    %c0_13 = arith.constant 0 : index
    %c0_14 = arith.constant 0 : index
    %c0_15 = arith.constant 0 : index
    %37 = vector.load %arg6[%c0_13, %c0_14, %c0_15] : memref<1x1x256xf32, #tpu.memory_space<vmem>>, vector<1x1x256xf32>
    %38 = vector.shape_cast %37 : vector<1x1x256xf32> to vector<1x256xf32>
    %39 = arith.addf %38, %36 : vector<1x256xf32>
    %c0_16 = arith.constant 0 : index
    %c0_17 = arith.constant 0 : index
    %c0_18 = arith.constant 0 : index
    %40 = vector.load %arg6[%c0_16, %c0_17, %c0_18] : memref<1x1x256xf32, #tpu.memory_space<vmem>>, vector<1x1x256xf32>
    %41 = vector.shape_cast %40 : vector<1x1x256xf32> to vector<1x256xf32>
    %42 = vector.shape_cast %39 : vector<1x256xf32> to vector<1x1x256xf32>
    tpu.vector_store %arg6[%c0_16, %c0_17, %c0_18], %42 {strides = array<i32>} : memref<1x1x256xf32, #tpu.memory_space<vmem>>, vector<1x1x256xf32>,
    return
  }
  func.func @transform_0(%arg0: i32, %arg1: i32, %arg2: i32) -> (i32, i32, i32) {
    %c1_i32 = arith.constant 1 : i32
    %0 = arith.muli %arg1, %c1_i32 : i32
    %1 = arith.addi %0, %arg2 : i32
    %c0_i32 = arith.constant 0 : i32
    %c0_i32_0 = arith.constant 0 : i32
    return %arg0, %c0_i32, %1 : i32, i32, i32
  }
  func.func @transform_1(%arg0: i32, %arg1: i32, %arg2: i32) -> (i32, i32, i32) {
    %c1_i32 = arith.constant 1 : i32
    %0 = arith.muli %arg1, %c1_i32 : i32
    %1 = arith.addi %0, %arg2 : i32
    %c0_i32 = arith.constant 0 : i32
    %c0_i32_0 = arith.constant 0 : i32
    return %arg0, %c0_i32, %1 : i32, i32, i32
  }
  func.func @transform_2(%arg0: i32, %arg1: i32, %arg2: i32) -> (i32, i32) {
    %c0_i32 = arith.constant 0 : i32
    %c0_i32_0 = arith.constant 0 : i32
    %c0_i32_1 = arith.constant 0 : i32
    return %c0_i32, %c0_i32_0 : i32, i32
  }
  func.func @transform_3(%arg0: i32, %arg1: i32, %arg2: i32) -> (i32, i32, i32) {
    %c1_i32 = arith.constant 1 : i32
    %0 = arith.muli %arg0, %c1_i32 : i32
    %1 = arith.addi %0, %arg1 : i32
    %c0_i32 = arith.constant 0 : i32
    %c0_i32_0 = arith.constant 0 : i32
    %c0_i32_1 = arith.constant 0 : i32
    return %1, %c0_i32, %c0_i32_0 : i32, i32, i32
  }
}

</mosaic_0001>

<llo_original>
// kernel: tpu_custom_call.1
$region0: #{tpu_custom_call.1}
  #allocation0 [shape = 'u32[]', space=smem, size = 0x4, offset = 0x4, fixed_abs, tag = 'smem constant byte address 0x4 - core index']
  #allocation1 [shape = 'u32[144,128]{1,0:T(1,128)}', space=vmem, size = 0x12000, scoped, tag = 'internal scratch']
  %s0 = inlined_call_operand.hbm [shape: f32[2,4,256], index: 0, kind: input, shape index: {}]
  %s1 = inlined_call_operand.vmem [shape: s32[2,1,256], index: 1, kind: input, shape index: {}]
  %s2 = inlined_call_operand.vmem [shape: f32[4,1], index: 2, kind: input, shape index: {}]
  %s3 = inlined_call_operand.hbm [shape: f32[2,1,256], index: 3, kind: output, shape index: {}]
  %s4 = sld [smem:[#allocation0]]
  $region53: #{tpu_custom_call.1} parent=0
    _
  %s6 = ssub.s32 1, %s4
  %s7 = scalar_select 0, %s6, %s4
  $region1: #{tpu_custom_call.1} parent=0
    #allocation2 [shape = 'u8[8192]{0}', space=vmem, size = 0x2000, scoped, tag = 'input window, operand 0']
    #allocation3 [shape = 's32[2]{0}', space=sflag, size = 0x8, scoped, tag = 'scoped memory for tpu_custom_call.1']
    #allocation4 [shape = 's32[2]{0}', space=sflag, size = 0x8, scoped, tag = 'scoped memory for tpu_custom_call.1']
    #allocation5 [shape = 'u8[2048]{0}', space=vmem, size = 0x800, scoped, tag = 'output window, operand 0']
    %8 = vsyncpa [#allocation3], 0
    %s9 = scalar_lea.sflag [#allocation3], 1
    %10 = vsyncpa %s9, 0
    %11 = vsyncpa [#allocation4], 0
    %s12 = scalar_lea.sflag [#allocation4], 1
    %13 = vsyncpa %s12, 0
    loop: start=0, step=1, limit=4
    $region2: #{tpu_custom_call.1} parent=1 // loop_pre_header
      _
    $region3: #{tpu_custom_call.1} parent=1 // loop_header
      %s15 = sphi 0, %s19
      %p16 = scmp.ge.s32.totalorder %s15, 4
      %s22 = sphi 0, %s41
      %s23 = sphi 0, %s37
      %s24 = sphi 0, %s33
      %s25 = sphi 0, %s22
      %s26 = sphi 0, %s23
      %s27 = sphi 0, %s24
      %s28 = sphi 0, %s25
      %s29 = sphi 0, %s26
      %s30 = sphi 0, %s27
      %s48 = sphi 0, %s50
      %s51 = sphi 0, %s48
      %s52 = sphi 0, %s51
      %s68 = sphi 0, %s52
      %s78 = sphi 0, %s80
      %s81 = sphi 0, %s78
      %s82 = sphi 0, %s81
      %s98 = sphi 0, %s82
      %s102 = sphi 0, %s102
      %s104 = sphi 0, %s102
      %s105 = sphi 0, %s104
      %s119 = sphi 0, %s105
      %s127 = sphi 0, %s129
      %s130 = sphi 0, %s127
      %s131 = sphi 0, %s130
      %s147 = sphi 0, %s131
    $region4: #{tpu_custom_call.1} parent=1 // loop_header_branch
      %18 = sbr.rel (%p16) target = $region8
    $region5: #{tpu_custom_call.1} parent=1 // loop_body
      %s20 = ssub.s32 %s15, 1
      %s21 = ssub.s32 %s15, 2
      %s31 = sadd.s32 1, %s24
      %p32 = scmp.ge.s32.totalorder %s31, 1
      %s33 = scalar_select %p32, 0, %s31
      %s34 = sadd.s32 1, %s23
      %s35 = scalar_select %p32, %s34, %s23
      %p36 = scmp.ge.s32.totalorder %s35, 1
      %s37 = scalar_select %p36, 0, %s35
      %s38 = sadd.s32 1, %s22
      %s39 = scalar_select %p36, %s38, %s22
      %p40 = scmp.ge.s32.totalorder %s39, 2
      %s41 = scalar_select %p40, 0, %s39
      %s42 = sadd.s32 %s23, %s24
      %s43 = sadd.s32 %s37, %s33
      %s44 = ssub.s32 %s22, %s41
      %s45 = ssub.s32 %s42, %s43
      %s46 = sor.u32 %s44, %s45
      %p47 = scmp.eq.s32.totalorder %s46, 0
      %s49 = sadd.s32 %s48, 1
      %s50 = scalar_select %p47, %s48, %s49
      %p53 = pneg %p47
      %p54 = scmp.eq.s32.totalorder %s15, 1
      %p55 = por %p53, %p54
      %p56 = scmp.ne.s32.totalorder %s48, %s51
      %p57 = scmp.eq.s32.totalorder %s15, 0
      %p58 = por %p56, %p57
      %p59 = scmp.ne.s32.totalorder %s48, %s51
      %p60 = scmp.eq.s32.totalorder %s20, 1
      %p61 = por %p59, %p60
      %p62 = scmp.ne.s32.totalorder %s51, %s52
      %p63 = scmp.eq.s32.totalorder %s20, 0
      %p64 = por %p62, %p63
      %p65 = scmp.ne.s32.totalorder %s51, %s52
      %p66 = scmp.eq.s32.totalorder %s21, 1
      %p67 = por %p65, %p66
      %p69 = scmp.ne.s32.totalorder %s52, %s68
      %p70 = scmp.eq.s32.totalorder %s21, 0
      %p71 = por %p69, %p70
      %s72 = sadd.s32 %s23, %s24
      %s73 = sadd.s32 %s37, %s33
      %s74 = ssub.s32 %s22, %s41
      %s75 = ssub.s32 %s72, %s73
      %s76 = sor.u32 %s74, %s75
      %p77 = scmp.eq.s32.totalorder %s76, 0
      %s79 = sadd.s32 %s78, 1
      %s80 = scalar_select %p77, %s78, %s79
      %p83 = pneg %p77
      %p84 = scmp.eq.s32.totalorder %s15, 1
      %p85 = por %p83, %p84
      %p86 = scmp.ne.s32.totalorder %s78, %s81
      %p87 = scmp.eq.s32.totalorder %s15, 0
      %p88 = por %p86, %p87
      %p89 = scmp.ne.s32.totalorder %s78, %s81
      %p90 = scmp.eq.s32.totalorder %s20, 1
      %p91 = por %p89, %p90
      %p92 = scmp.ne.s32.totalorder %s81, %s82
      %p93 = scmp.eq.s32.totalorder %s20, 0
      %p94 = por %p92, %p93
      %p95 = scmp.ne.s32.totalorder %s81, %s82
      %p96 = scmp.eq.s32.totalorder %s21, 1
      %p97 = por %p95, %p96
      %p99 = scmp.ne.s32.totalorder %s82, %s98
      %p100 = scmp.eq.s32.totalorder %s21, 0
      %p101 = por %p99, %p100
      %s103 = sadd.s32 %s102, 1
      %p106 = scmp.eq.s32.totalorder %s15, 1
      %p107 = scmp.ne.s32.totalorder %s102, %s104
      %p108 = scmp.eq.s32.totalorder %s15, 0
      %p109 = por %p107, %p108
      %p110 = scmp.ne.s32.totalorder %s102, %s104
      %p111 = scmp.eq.s32.totalorder %s20, 1
      %p112 = por %p110, %p111
      %p113 = scmp.ne.s32.totalorder %s104, %s105
      %p114 = scmp.eq.s32.totalorder %s20, 0
      %p115 = por %p113, %p114
      %p116 = scmp.ne.s32.totalorder %s104, %s105
      %p117 = scmp.eq.s32.totalorder %s21, 1
      %p118 = por %p116, %p117
      %p120 = scmp.ne.s32.totalorder %s105, %s119
      %p121 = scmp.eq.s32.totalorder %s21, 0
      %p122 = por %p120, %p121
      %s123 = sadd.s32 %s22, %s23
      %s124 = sadd.s32 %s41, %s37
      %s125 = ssub.s32 %s123, %s124
      %p126 = scmp.eq.s32.totalorder %s125, 0
      %s128 = sadd.s32 %s127, 1
      %s129 = scalar_select %p126, %s127, %s128
      %p132 = pneg %p126
      %p133 = scmp.eq.s32.totalorder %s15, 1
      %p134 = por %p132, %p133
      %p135 = scmp.ne.s32.totalorder %s127, %s130
      %p136 = scmp.eq.s32.totalorder %s15, 0
      %p137 = por %p135, %p136
      %p138 = scmp.ne.s32.totalorder %s127, %s130
      %p139 = scmp.eq.s32.totalorder %s20, 1
      %p140 = por %p138, %p139
      %p141 = scmp.ne.s32.totalorder %s130, %s131
      %p142 = scmp.eq.s32.totalorder %s20, 0
      %p143 = por %p141, %p142
      %p144 = scmp.ne.s32.totalorder %s130, %s131
      %p145 = scmp.eq.s32.totalorder %s21, 1
      %p146 = por %p144, %p145
      %p148 = scmp.ne.s32.totalorder %s131, %s147
      %p149 = scmp.eq.s32.totalorder %s21, 0
      %p150 = por %p148, %p149
      %p151 = scmp.le.s32.totalorder 1, %s15
      %p152 = scmp.lt.s32.totalorder %s15, 3
      %p153 = pnand %p151, %p152
      %p154 = pneg %p153
      // Predicated region
      $region9: #{tpu_custom_call.1} parent=5 // pred_check
        _
      $region10: #{tpu_custom_call.1} parent=5 // pred_check_branch
        %156 = sbr.rel (%p153) target = $region12
      $region11: #{tpu_custom_call.1} parent=5 // pred_region
        %s157 = ssub.s32 %s15, 1
        // Predicated region
        $region13: #{tpu_custom_call.1} parent=11 // pred_check
          %p158 = pneg %p115
        $region14: #{tpu_custom_call.1} parent=11 // pred_check_branch
          %160 = sbr.rel (%p158) target = $region16
        $region15: #{tpu_custom_call.1} parent=11 // pred_region
          _
        $region16: #{tpu_custom_call.1} parent=11 // pred_fallthru
          _
      $region12: #{tpu_custom_call.1} parent=5 // pred_fallthru
        _
      %p161 = scmp.lt.s32.totalorder %s15, 2
      // Predicated region
      $region17: #{tpu_custom_call.1} parent=5 // pred_check
        %p162 = pneg %p161
      $region18: #{tpu_custom_call.1} parent=5 // pred_check_branch
        %164 = sbr.rel (%p162) target = $region20
      $region19: #{tpu_custom_call.1} parent=5 // pred_region
        // Predicated region
        $region21: #{tpu_custom_call.1} parent=19 // pred_check
          %p165 = pneg %p58
        $region22: #{tpu_custom_call.1} parent=19 // pred_check_branch
          %167 = sbr.rel (%p165) target = $region24
        $region23: #{tpu_custom_call.1} parent=19 // pred_region
          %s168 = sand.u32 %s48, 1
          %s169 = scalar_lea.sflag [#allocation3], %s168
          %s170 = sand.u32 %s48, 1
          %s171 = smul.addr %s170, 8
          %s172 = scalar_lea.vmem [#allocation2], %s171
          %s173 = sadd.s32 %s23, %s24
          %s174 = smul.u32 2, %s173
          %s176 = ssub.s32 128, 128
          %177 = vsyncadd %s169, %s176
          %s178 = smul.addr %s22, 2
          %s179 = sadd.s32 %s174, %s178
          %s180 = smul.addr %s179, 64
          %s181 = scalar_lea.hbm %s0, %s180
          %s183 = sshll.u32 %s172, 4
          %s184 = int_to_ptr.vmem [resolvable:$true] %s183
          %186 = dma.hbm_to_vmem [thread:$0]  %s181, 128, %s184, %s169
        $region24: #{tpu_custom_call.1} parent=19 // pred_fallthru
          _
        // Predicated region
        $region25: #{tpu_custom_call.1} parent=19 // pred_check
          %p187 = pneg %p88
        $region26: #{tpu_custom_call.1} parent=19 // pred_check_branch
          %189 = sbr.rel (%p187) target = $region28
        $region27: #{tpu_custom_call.1} parent=19 // pred_region
          %s190 = sadd.s32 %s23, %s24
          %s191 = smul.u32 2, %s190
          %p192 = scmp.lt.s32.totalorder %s22, 1
          %s193 = scalar_select %p192, %s22, 1
          %p194 = scmp.lt.s32.totalorder %s191, 1
          %s195 = scalar_select %p194, %s191, 1
          %s196 = smul.addr %s193, 2
          %s197 = sadd.s32 %s195, %s196
          %s198 = scalar_lea.vmem %s1, %s197
          %s199 = sadd.s32 %s23, %s24
          %s200 = smul.u32 2, %s199
        $region28: #{tpu_custom_call.1} parent=19 // pred_fallthru
          _
      $region20: #{tpu_custom_call.1} parent=5 // pred_fallthru
        _
      %p201 = scmp.le.s32.totalorder 1, %s15
      %p202 = scmp.lt.s32.totalorder %s15, 3
      %p203 = pnand %p201, %p202
      %p204 = pneg %p203
      // Predicated region
      $region29: #{tpu_custom_call.1} parent=5 // pred_check
        _
      $region30: #{tpu_custom_call.1} parent=5 // pred_check_branch
        %206 = sbr.rel (%p203) target = $region32
      $region31: #{tpu_custom_call.1} parent=5 // pred_region
        %s207 = ssub.s32 %s15, 1
        %s208 = sand.u32 %s51, 1
        %s209 = scalar_lea.sflag [#allocation3], %s208
        %s210 = sand.u32 %s51, 1
        %s211 = smul.addr %s210, 8
        %s212 = scalar_lea.vmem [#allocation2], %s211
        // Predicated region
        $region33: #{tpu_custom_call.1} parent=31 // pred_check
          %p213 = pneg %p64
        $region34: #{tpu_custom_call.1} parent=31 // pred_check_branch
          %215 = sbr.rel (%p213) target = $region36
        $region35: #{tpu_custom_call.1} parent=31 // pred_region
          %216 = dma.done %s209, 128
        $region36: #{tpu_custom_call.1} parent=31 // pred_fallthru
          _
        %s217 = sand.u32 %s51, 1
        %s218 = scalar_lea.sflag [#allocation3], %s217
        %s219 = sand.u32 %s51, 1
        %s220 = smul.addr %s219, 8
        %s221 = scalar_lea.vmem [#allocation2], %s220
        %p222 = pneg %p64
        %p223 = pneg %p61
        %s224 = sadd.s32 %s26, %s27
        %s225 = smul.u32 2, %s224
        %p226 = scmp.lt.s32.totalorder %s25, 1
        %s227 = scalar_select %p226, %s25, 1
        %p228 = scmp.lt.s32.totalorder %s225, 1
        %s229 = scalar_select %p228, %s225, 1
        %s230 = smul.addr %s227, 2
        %s231 = sadd.s32 %s229, %s230
        %s232 = scalar_lea.vmem %s1, %s231
        %p233 = pneg %p94
        %p234 = pneg %p91
        %p235 = pneg %p115
        %p236 = pneg %p112
        %p237 = pneg %p143
        %p238 = pneg %p140
        %s239 = sand.u32 %s130, 1
        %s240 = scalar_lea.sflag [#allocation4], %s239
        %s241 = sand.u32 %s130, 1
        %s242 = smul.addr %s241, 2
        %s243 = scalar_lea.vmem [#allocation5], %s242
        %s244 = sadd.s32 %s26, %s27
        %s245 = smul.u32 2, %s244
        %s246 = sadd.s32 %s26, %s27
        %s247 = smul.u32 2, %s246
        %p248 = scmp.lt.s32.totalorder %s25, 1
        %s249 = scalar_select %p248, %s25, 1
        %p250 = scmp.lt.s32.totalorder %s247, 1
        %s251 = scalar_select %p250, %s247, 1
        %s252 = smul.addr %s249, 2
        %s253 = sadd.s32 %s251, %s252
        %s254 = scalar_lea.vmem %s1, %s253
        %s255 = sadd.s32 %s26, %s27
        %s256 = smul.u32 2, %s255
        %s257 = sadd.s32 %s25, %s26
        %p258 = scmp.eq.s32.totalorder %s27, 0
        // Predicated region
        $region37: #{tpu_custom_call.1} parent=31 // pred_check
          %p259 = pneg %p258
        $region38: #{tpu_custom_call.1} parent=31 // pred_check_branch
          %261 = sbr.rel (%p259) target = $region40
        $region39: #{tpu_custom_call.1} parent=31 // pred_region
          %v262 = vlaneseq
          %vm263 = vcmp.ge.s32.totalorder %v262, 0
          %vm264 = vcmp.lt.s32.totalorder %v262, 256
          %vm265 = vmand %vm263, %vm264
          %266 = vst.msk [vmem:[%s243] sm:$0x3] %vm265, 0.0
        $region40: #{tpu_custom_call.1} parent=31 // pred_fallthru
          _
        %v267 = vld [vmem:[%s212] sm:$0xff]
        %v268 = vld [vmem:[%s254] sm:$0x3]
        %v270 = vcombine.high %v267, %v267
        %vm272 = vcmask 1043456
        %v273 = vsel %vm272, %v267, -inf
        %v274 = vrot.slane %v273, 4
        %v275 = vmax.f32 %v273, %v274
        %v276 = vrot.slane %v275, 2
        %v277 = vmax.f32 %v275, %v276
        %v278 = vrot.slane %v277, 1
        %v279 = vmax.f32 %v277, %v278
        %v280 = vsel %vm272, %v270, -inf
        %v281 = vrot.slane %v280, 4
        %v282 = vmax.f32 %v280, %v281
        %v283 = vrot.slane %v282, 2
        %v284 = vmax.f32 %v282, %v283
        %v285 = vrot.slane %v284, 1
        %v286 = vmax.f32 %v284, %v285
        %v289 = vcombine.low %v279, %v286
        %v291 = vsub.f32 %v267, %v289
        %v292 = vmul.f32 %v291, 1.442695
        %v293 = vpow.pop %v292
        %v295 = vcombine.high %v293, %v293
        %v297 = vsel %vm272, %v293, 0.0
        %v298 = vrot.slane %v297, 4
        %v299 = vadd.f32 %v297, %v298
        %v300 = vrot.slane %v299, 2
        %v301 = vadd.f32 %v299, %v300
        %v302 = vrot.slane %v301, 1
        %v303 = vadd.f32 %v301, %v302
        %v304 = vsel %vm272, %v295, 0.0
        %v305 = vrot.slane %v304, 4
        %v306 = vadd.f32 %v304, %v305
        %v307 = vrot.slane %v306, 2
        %v308 = vadd.f32 %v306, %v307
        %v309 = vrot.slane %v308, 1
        %v310 = vadd.f32 %v308, %v309
        %v311 = vlaneseq
        %v312 = vshrl.u32 %v311, 7
        %v313 = vlaneseq
        %v314 = vshrl.u32 %v313, 7
        %v315 = vsub.s32 0, %v314
        %v316 = vrot.slane %v268, %v315
        %v317 = vlaneseq
        %v318 = vshrl.u32 %v317, 7
        %v319 = vsub.s32 1, %v318
        %v320 = vrot.slane %v268, %v319
        %vm321 = vcmp.eq.s32.totalorder %v312, %v316
        %vm322 = vcmp.eq.s32.totalorder %v312, %v320
        %v323 = vsel %vm321, 1, 0
        %v324 = vsel %vm322, 1, 0
        %v325 = vcvt.s32.f32 %v323
        %v326 = vcvt.s32.f32 %v324
        %v328 = vcombine.high %v291, %v291
        %v330 = vmul.f32 %v325, %v291
        %v331 = vmul.f32 %v326, %v328
        %v332 = vsel %vm272, %v330, 0.0
        %v333 = vrot.slane %v332, 4
        %v334 = vadd.f32 %v332, %v333
        %v335 = vrot.slane %v334, 2
        %v336 = vadd.f32 %v334, %v335
        %v337 = vrot.slane %v336, 1
        %v338 = vadd.f32 %v336, %v337
        %v339 = vsel %vm272, %v331, 0.0
        %v340 = vrot.slane %v339, 4
        %v341 = vadd.f32 %v339, %v340
        %v342 = vrot.slane %v341, 2
        %v343 = vadd.f32 %v341, %v342
        %v344 = vrot.slane %v343, 1
        %v345 = vadd.f32 %v343, %v344
        %v346 = vlog2.pop %v303
        %v347 = vmul.f32 %v346, 0.6931472
        %v348 = vlog2.pop %v310
        %v349 = vmul.f32 %v348, 0.6931472
        %v350 = vsub.f32 %v338, %v347
        %v351 = vsub.f32 %v345, %v349
        %v352 = vsub.f32 0.0, %v350
        %v353 = vsub.f32 0.0, %v351
        %v354 = vld [vmem:[%s2] sm:$0xf]
        %356 = vset.pattern.permute.xlu0 0
        %357 = vperm.xlu0 %356, %v354
        %v358 = vpop.permute.xlu0 %357
        %v360 = vmul.f32 %v325, %v358
        %v361 = vmul.f32 %v326, %v358
        %v362 = vsel %vm272, %v360, 0.0
        %v363 = vrot.slane %v362, 4
        %v364 = vadd.f32 %v362, %v363
        %v365 = vrot.slane %v364, 2
        %v366 = vadd.f32 %v364, %v365
        %v367 = vrot.slane %v366, 1
        %v368 = vadd.f32 %v366, %v367
        %v369 = vsel %vm272, %v361, 0.0
        %v370 = vrot.slane %v369, 4
        %v371 = vadd.f32 %v369, %v370
        %v372 = vrot.slane %v371, 2
        %v373 = vadd.f32 %v371, %v372
        %v374 = vrot.slane %v373, 1
        %v375 = vadd.f32 %v373, %v374
        %v376 = vmul.f32 %v352, %v368
        %v377 = vmul.f32 %v353, %v375
        %v378 = vmul.f32 %v350, 1.442695
        %v379 = vpow.pop %v378
        %v380 = vmul.f32 %v351, 1.442695
        %v381 = vpow.pop %v380
        %v382 = vsub.f32 1.0, %v379
        %v383 = vsub.f32 1.0, %v381
        %v384 = vmul.f32 %v382, %v382
        %v385 = vmul.f32 %v383, %v383
        %v386 = vmul.f32 %v384, %v376
        %v387 = vmul.f32 %v385, %v377
        %v388 = vld [vmem:[%s243] sm:$0x3]
        %v391 = vcombine.low %v386, %v387
        %v393 = vunpack.c.l.s4 1966171168
        %v394 = vunpack.c.0.s8 %v393
        %v395 = vlaneseq
        %v396 = vshrl.u32 %v395, 7
        %v397 = vsub.s32 %v394, %v396
        %v398 = vrot.slane %v391, %v397
        %v400 = vunpack.c.l.s4 1966171168
        %v401 = vunpack.c.0.s8 %v400
        %v402 = vlaneseq
        %v403 = vshrl.u32 %v402, 7
        %v404 = vsub.s32 %v401, %v403
        %v405 = vrot.slane %v398, %v404
        %v407 = vadd.f32 %v388, %v405
        %v408 = vlaneseq
        %vm409 = vcmp.ge.s32.totalorder %v408, 0
        %vm410 = vcmp.lt.s32.totalorder %v408, 256
        %vm411 = vmand %vm409, %vm410
        %412 = vst.msk [vmem:[%s243] sm:$0x3] %vm411, %v407
        %s413 = sand.u32 %s130, 1
        %s414 = scalar_lea.sflag [#allocation4], %s413
        %s415 = sand.u32 %s130, 1
        %s416 = smul.addr %s415, 2
        %s417 = scalar_lea.vmem [#allocation5], %s416
        // Predicated region
        $region41: #{tpu_custom_call.1} parent=31 // pred_check
          %p418 = pneg %p140
        $region42: #{tpu_custom_call.1} parent=31 // pred_check_branch
          %420 = sbr.rel (%p418) target = $region44
        $region43: #{tpu_custom_call.1} parent=31 // pred_region
          %s421 = sadd.s32 %s25, %s26
          %s423 = ssub.s32 32, 32
          %424 = vsyncadd %s414, %s423
          %s425 = smul.addr %s421, 2
          %s426 = smul.addr %s425, 16
          %s427 = scalar_lea.hbm %s3, %s426
          %s429 = sshll.u32 %s417, 4
          %s430 = int_to_ptr.vmem [resolvable:$true] %s429
          %432 = dma.vmem_to_hbm [thread:$0]  %s430, 32, %s427, %s414
        $region44: #{tpu_custom_call.1} parent=31 // pred_fallthru
          _
      $region32: #{tpu_custom_call.1} parent=5 // pred_fallthru
        _
      %p433 = scmp.le.s32.totalorder 2, %s15
      // Predicated region
      $region45: #{tpu_custom_call.1} parent=5 // pred_check
        %p434 = pneg %p433
      $region46: #{tpu_custom_call.1} parent=5 // pred_check_branch
        %436 = sbr.rel (%p434) target = $region48
      $region47: #{tpu_custom_call.1} parent=5 // pred_region
        %s437 = ssub.s32 %s15, 2
        // Predicated region
        $region49: #{tpu_custom_call.1} parent=47 // pred_check
          %p438 = pneg %p146
        $region50: #{tpu_custom_call.1} parent=47 // pred_check_branch
          %440 = sbr.rel (%p438) target = $region52
        $region51: #{tpu_custom_call.1} parent=47 // pred_region
          %s441 = sand.u32 %s131, 1
          %s442 = scalar_lea.sflag [#allocation4], %s441
          %s443 = sand.u32 %s131, 1
          %s444 = smul.addr %s443, 2
          %s445 = scalar_lea.vmem [#allocation5], %s444
          %446 = dma.done %s442, 32
        $region52: #{tpu_custom_call.1} parent=47 // pred_fallthru
          _
      $region48: #{tpu_custom_call.1} parent=5 // pred_fallthru
        _
    $region6: #{tpu_custom_call.1} parent=1 // loop_footer
      %s19 = sadd.s32 1, %s15
    $region7: #{tpu_custom_call.1} parent=1 // loop_footer_branch
      %14 = sbr.rel target = $region3
    $region8: #{tpu_custom_call.1} parent=1 // loop_exit
      _
    %447 = vsyncpa [#allocation3], 1
    %s448 = scalar_lea.sflag [#allocation3], 1
    %449 = vsyncpa %s448, 1
    %450 = vsyncpa [#allocation4], 1
    %s451 = scalar_lea.sflag [#allocation4], 1
    %452 = vsyncpa %s451, 1

</llo_original>
